<compile_context>
chip_gen: v7x
topology: tpu7x:2x2x1
jax: 0.10.0
libtpu: 0.0.40
codegen_flags: <defaults>
</compile_context>

<pallas_src>
import functools

import jax
import jax.numpy as jnp
from jax.experimental import pallas as pl
from jax.experimental.pallas import tpu as pltpu


def _cdiv(a, b):
    return (a + b - 1) // b


def _nll_kernel(x_ref, y_ref, wy_ref, out_ref, acc_num, acc_den, *, n_valid):
    core = pl.program_id(0)          # parallel axis (TensorCore split)
    i = pl.program_id(1)             # arbitrary axis (row blocks handled by this core)
    spc = pl.num_programs(1)

    @pl.when(i == 0)
    def _():
        acc_num[...] = jnp.zeros_like(acc_num)
        acc_den[...] = jnp.zeros_like(acc_den)

    x = x_ref[...].astype(jnp.float32)          # (TN, C), cast in-kernel
    lbl = y_ref[...]                            # (TN, 1) int32
    w_row = wy_ref[...]                         # (TN, 1) f32  (precomputed weight[label])
    tn, nc = x.shape

    # numerically-stable logsumexp per row
    m = jnp.max(x, axis=-1, keepdims=True)                               # (TN,1)
    lse = m + jnp.log(jnp.sum(jnp.exp(x - m), axis=-1, keepdims=True))   # (TN,1)

    # one-hot gather of the label logit
    class_ids = jax.lax.broadcasted_iota(jnp.int32, (tn, nc), 1)
    picked = jnp.sum(jnp.where(class_ids == lbl, x, 0.0),
                     axis=-1, keepdims=True)                             # (TN,1)

    # mask rows beyond the real N (ragged tail block / over-covered block slots)
    g = core * spc + i                                                   # global block idx
    row_ids = g * tn + jax.lax.broadcasted_iota(jnp.int32, (tn, 1), 0)
    valid = row_ids < n_valid

    acc_num[...] += jnp.where(valid, w_row * (lse - picked), 0.0)
    acc_den[...] += jnp.where(valid, w_row, 0.0)

    # write this core's per-row partial sums once, at its last block
    @pl.when(i == spc - 1)
    def _():
        lane = jax.lax.broadcasted_iota(jnp.int32, (tn, 2), 1)
        out_ref[...] = jnp.where(lane == 0, acc_num[...], acc_den[...])


@functools.partial(jax.jit, static_argnames=("tile_n", "num_cores"))
def multi_pred_nll_loss(data, label, weight=None, *, tile_n=None, num_cores=2):
    """data: (B, L, C) logits (any float dtype); label: (B, L) int; weight: (C,) or None."""
    c = data.shape[-1]
    x = data.reshape(-1, c)                       # native dtype; no HBM upcast copy
    n = x.shape[0]
    y = label.reshape(-1).astype(jnp.int32)

    # hoist the class-weight gather out of the kernel (trivial (N,) gather)
    if weight is None:
        w_y = jnp.ones((n,), dtype=jnp.float32)
    else:
        w_y = jnp.asarray(weight, dtype=jnp.float32)[y]
    y2 = y.reshape(n, 1)
    wy2 = w_y.reshape(n, 1)

    # --- tile sizing: biggest row tile that fits a modest VMEM budget -------
    itemsize = jnp.dtype(x.dtype).itemsize
    if tile_n is None:
        budget = 8 * 1024 * 1024  # bytes for double-buffered logits + f32 working set
        tn = budget // (c * (2 * itemsize + 16))
        tn = max(16, min(1024, (tn // 16) * 16))
    else:
        tn = max(16, (int(tile_n) // 16) * 16)
    # don't over-cover tiny inputs
    tn = max(16, min(tn, _cdiv(n, 16) * 16))
    # TODO(synk): vocab-scale C (where even TN=16 blows VMEM) would need a C-tiling
    # grid axis with an online logsumexp; not needed for moderate class counts.

    nb = _cdiv(n, tn)                       # number of row blocks
    ncores = max(1, min(num_cores, nb))     # split row blocks across TensorCores
    spc = _cdiv(nb, ncores)                 # blocks per core (may over-cover; masked)

    def blk_idx(ci, i):
        # clamp so over-covering grid slots never issue an OOB DMA (they are
        # fully masked in-kernel anyway)
        return jnp.minimum(ci * spc + i, nb - 1)

    kernel = functools.partial(_nll_kernel, n_valid=n)

    parts = pl.pallas_call(
        kernel,
        out_shape=jax.ShapeDtypeStruct((ncores * tn, 2), jnp.float32),
        grid_spec=pltpu.PrefetchScalarGridSpec(
            num_scalar_prefetch=0,
            grid=(ncores, spc),
            in_specs=[
                pl.BlockSpec((tn, c), lambda ci, i: (blk_idx(ci, i), 0)),  # logits
                pl.BlockSpec((tn, 1), lambda ci, i: (blk_idx(ci, i), 0)),  # labels
                pl.BlockSpec((tn, 1), lambda ci, i: (blk_idx(ci, i), 0)),  # weight[label]
            ],
            out_specs=pl.BlockSpec((tn, 2), lambda ci, i: (ci, 0)),        # per-core partials
            scratch_shapes=[
                pltpu.VMEM((tn, 1), jnp.float32),   # per-row weighted-loss accumulator
                pltpu.VMEM((tn, 1), jnp.float32),   # per-row weight accumulator
            ],
        ),
        compiler_params=pltpu.CompilerParams(
            dimension_semantics=("parallel", "arbitrary"),
            vmem_limit_bytes=32 * 1024 * 1024,
        ),
    )(x, y2, wy2)

    num = jnp.sum(parts[:, 0])
    den = jnp.sum(parts[:, 1])
    return num / den


def _reference_loss(data, label, weight=None):
    c = data.shape[-1]
    if weight is None:
        weight = jnp.ones((c,), dtype=jnp.float32)
    x = data.reshape(-1, c).astype(jnp.float32)
    y = label.reshape(-1).astype(jnp.int32)
    logp = jax.nn.log_softmax(x, axis=-1)
    nll = -jnp.take_along_axis(logp, y[:, None], axis=-1)[:, 0]
    w = jnp.asarray(weight, dtype=jnp.float32)[y]
    return jnp.sum(w * nll) / jnp.sum(w)


if __name__ == "__main__":
    key = jax.random.PRNGKey(0)
    k1, k2, k3, k4 = jax.random.split(key, 4)

    # Case 1: f32 logits, explicit non-uniform class weights (module's `weight`)
    B, L, C = 2, 8, 16  # batch, sample_label_num, num classes
    data = jax.random.normal(k1, (B, L, C), dtype=jnp.float32)
    label = jax.random.randint(k2, (B, L), 0, C, dtype=jnp.int32)
    weight = 1.0 + 0.1 * jnp.arange(C, dtype=jnp.float32)

    loss = multi_pred_nll_loss(data, label, weight)
    jax.block_until_ready(loss)
    ref = _reference_loss(data, label, weight)
    assert jnp.allclose(loss, ref, rtol=1e-5, atol=1e-5), (loss, ref)

    # Case 2: bf16 logits (native-dtype path), ragged row count, weight=None
    B2, L2 = 3, 7
    data2 = jax.random.normal(k3, (B2, L2, C), dtype=jnp.bfloat16)
    label2 = jax.random.randint(k4, (B2, L2), 0, C, dtype=jnp.int32)

    loss2 = multi_pred_nll_loss(data2, label2, None)
    jax.block_until_ready(loss2)
    ref2 = _reference_loss(data2, label2, None)
    assert jnp.allclose(loss2, ref2, rtol=1e-4, atol=1e-4), (loss2, ref2)

    # TODO(synk): the list-of-tensors input path (per-sample nll_loss of
    # pre-computed log-probs, then mean over samples) is ragged Python control
    # flow; only the Tensor fast-path is kernelized.
    print("KERNEL_OK")
</pallas_src>

<mosaic_0001>
module attributes {stable_mosaic.version = 11 : i64} {
  func.func @_nll_kernel(%arg0: i32, %arg1: i32, %arg2: memref<16x16xf32, #tpu.memory_space<vmem>>, %arg3: memref<16x1xi32, #tpu.memory_space<vmem>>, %arg4: memref<16x1xf32, #tpu.memory_space<vmem>>, %arg5: memref<16x2xf32, #tpu.memory_space<vmem>>, %arg6: memref<16x1xf32, #tpu.memory_space<vmem>>, %arg7: memref<16x1xf32, #tpu.memory_space<vmem>>) attributes {dimension_semantics = [#tpu.dimension_semantics<parallel>, #tpu.dimension_semantics<arbitrary>], iteration_bounds = array<i64: 1, 1>, scalar_prefetch = 0 : i64, scratch_operands = 2 : i64, tpu.core_type = #tpu.core_type<tc>, window_params = [{transform_indices = @transform_0, window_bounds = array<i64: 16, 16>}, {transform_indices = @transform_1, window_bounds = array<i64: 16, 1>}, {transform_indices = @transform_2, window_bounds = array<i64: 16, 1>}, {transform_indices = @transform_3, window_bounds = array<i64: 16, 2>}]} {
    %c0_i32 = arith.constant 0 : i32
    %0 = arith.cmpi eq, %arg1, %c0_i32 : i32
    %1 = arith.extui %0 : i1 to i32
    %c0_i32_0 = arith.constant 0 : i32
    %2 = arith.cmpi ne, %1, %c0_i32_0 : i32
    scf.if %2 {
      %cst_22 = arith.constant 0.000000e+00 : f32
      %45 = vector.broadcast %cst_22 : f32 to vector<16x1xf32>
      %c0_23 = arith.constant 0 : index
      %c0_24 = arith.constant 0 : index
      %46 = vector.load %arg6[%c0_23, %c0_24] : memref<16x1xf32, #tpu.memory_space<vmem>>, vector<16x1xf32>
      tpu.vector_store %arg6[%c0_23, %c0_24], %45 {strides = array<i32>} : memref<16x1xf32, #tpu.memory_space<vmem>>, vector<16x1xf32>,
      %cst_25 = arith.constant 0.000000e+00 : f32
      %47 = vector.broadcast %cst_25 : f32 to vector<16x1xf32>
      %c0_26 = arith.constant 0 : index
      %c0_27 = arith.constant 0 : index
      %48 = vector.load %arg7[%c0_26, %c0_27] : memref<16x1xf32, #tpu.memory_space<vmem>>, vector<16x1xf32>
      tpu.vector_store %arg7[%c0_26, %c0_27], %47 {strides = array<i32>} : memref<16x1xf32, #tpu.memory_space<vmem>>, vector<16x1xf32>,
    } else {
    }
    %c0 = arith.constant 0 : index
    %c0_1 = arith.constant 0 : index
    %3 = vector.load %arg2[%c0, %c0_1] : memref<16x16xf32, #tpu.memory_space<vmem>>, vector<16x16xf32>
    %c0_2 = arith.constant 0 : index
    %c0_3 = arith.constant 0 : index
    %4 = vector.load %arg3[%c0_2, %c0_3] : memref<16x1xi32, #tpu.memory_space<vmem>>, vector<16x1xi32>
    %c0_4 = arith.constant 0 : index
    %c0_5 = arith.constant 0 : index
    %5 = vector.load %arg4[%c0_4, %c0_5] : memref<16x1xf32, #tpu.memory_space<vmem>>, vector<16x1xf32>
    %cst = arith.constant dense<0xFF800000> : vector<16xf32>
    %6 = vector.multi_reduction <maximumf>, %3, %cst [1] : vector<16x16xf32> to vector<16xf32>
    %7 = vector.shape_cast %6 : vector<16xf32> to vector<16x1xf32>
    %8 = vector.broadcast %7 : vector<16x1xf32> to vector<16x16xf32>
    %9 = arith.subf %3, %8 : vector<16x16xf32>
    %10 = math.exp %9 : vector<16x16xf32>
    %cst_6 = arith.constant dense<0.000000e+00> : vector<16xf32>
    %11 = vector.multi_reduction <add>, %10, %cst_6 [1] : vector<16x16xf32> to vector<16xf32>
    %12 = vector.shape_cast %11 : vector<16xf32> to vector<16x1xf32>
    %13 = math.log %12 : vector<16x1xf32>
    %14 = arith.addf %7, %13 : vector<16x1xf32>
    %15 = tpu.iota {dimensions = array<i32: 1>} : vector<16x16xi32>
    %16 = vector.broadcast %4 : vector<16x1xi32> to vector<16x16xi32>
    %17 = arith.cmpi eq, %15, %16 : vector<16x16xi32>
    %cst_7 = arith.constant 0.000000e+00 : f32
    %18 = vector.broadcast %cst_7 : f32 to vector<16x16xf32>
    %19 = arith.select %17, %3, %18 : vector<16x16xi1>, vector<16x16xf32>
    %cst_8 = arith.constant dense<0.000000e+00> : vector<16xf32>
    %20 = vector.multi_reduction <add>, %19, %cst_8 [1] : vector<16x16xf32> to vector<16xf32>
    %21 = vector.shape_cast %20 : vector<16xf32> to vector<16x1xf32>
    %c1_i32 = arith.constant 1 : i32
    %22 = arith.muli %arg0, %c1_i32 : i32
    %23 = arith.addi %22, %arg1 : i32
    %c16_i32 = arith.constant 16 : i32
    %24 = arith.muli %23, %c16_i32 : i32
    %25 = tpu.iota {dimensions = array<i32: 0>} : vector<16x1xi32>
    %26 = vector.broadcast %24 : i32 to vector<16x1xi32>
    %27 = arith.addi %26, %25 : vector<16x1xi32>
    %c16_i32_9 = arith.constant 16 : i32
    %28 = vector.broadcast %c16_i32_9 : i32 to vector<16x1xi32>
    %29 = arith.cmpi slt, %27, %28 : vector<16x1xi32>
    %c0_10 = arith.constant 0 : index
    %c0_11 = arith.constant 0 : index
    %30 = vector.load %arg6[%c0_10, %c0_11] : memref<16x1xf32, #tpu.memory_space<vmem>>, vector<16x1xf32>
    %31 = arith.subf %14, %21 : vector<16x1xf32>
    %32 = arith.mulf %5, %31 : vector<16x1xf32>
    %cst_12 = arith.constant 0.000000e+00 : f32
    %33 = vector.broadcast %cst_12 : f32 to vector<16x1xf32>
    %34 = arith.select %29, %32, %33 : vector<16x1xi1>, vector<16x1xf32>
    %35 = arith.addf %30, %34 : vector<16x1xf32>
    %c0_13 = arith.constant 0 : index
    %c0_14 = arith.constant 0 : index
    %36 = vector.load %arg6[%c0_13, %c0_14] : memref<16x1xf32, #tpu.memory_space<vmem>>, vector<16x1xf32>
    tpu.vector_store %arg6[%c0_13, %c0_14], %35 {strides = array<i32>} : memref<16x1xf32, #tpu.memory_space<vmem>>, vector<16x1xf32>,
    %c0_15 = arith.constant 0 : index
    %c0_16 = arith.constant 0 : index
    %37 = vector.load %arg7[%c0_15, %c0_16] : memref<16x1xf32, #tpu.memory_space<vmem>>, vector<16x1xf32>
    %cst_17 = arith.constant 0.000000e+00 : f32
    %38 = vector.broadcast %cst_17 : f32 to vector<16x1xf32>
    %39 = arith.select %29, %5, %38 : vector<16x1xi1>, vector<16x1xf32>
    %40 = arith.addf %37, %39 : vector<16x1xf32>
    %c0_18 = arith.constant 0 : index
    %c0_19 = arith.constant 0 : index
    %41 = vector.load %arg7[%c0_18, %c0_19] : memref<16x1xf32, #tpu.memory_space<vmem>>, vector<16x1xf32>
    tpu.vector_store %arg7[%c0_18, %c0_19], %40 {strides = array<i32>} : memref<16x1xf32, #tpu.memory_space<vmem>>, vector<16x1xf32>,
    %c0_i32_20 = arith.constant 0 : i32
    %42 = arith.cmpi eq, %arg1, %c0_i32_20 : i32
    %43 = arith.extui %42 : i1 to i32
    %c0_i32_21 = arith.constant 0 : i32
    %44 = arith.cmpi ne, %43, %c0_i32_21 : i32
    scf.if %44 {
      %45 = tpu.iota {dimensions = array<i32: 1>} : vector<16x2xi32>
      %c0_i32_22 = arith.constant 0 : i32
      %46 = vector.broadcast %c0_i32_22 : i32 to vector<16x2xi32>
      %47 = arith.cmpi eq, %45, %46 : vector<16x2xi32>
      %c0_23 = arith.constant 0 : index
      %c0_24 = arith.constant 0 : index
      %48 = vector.load %arg6[%c0_23, %c0_24] : memref<16x1xf32, #tpu.memory_space<vmem>>, vector<16x1xf32>
      %c0_25 = arith.constant 0 : index
      %c0_26 = arith.constant 0 : index
      %49 = vector.load %arg7[%c0_25, %c0_26] : memref<16x1xf32, #tpu.memory_space<vmem>>, vector<16x1xf32>
      %50 = vector.shape_cast %48 : vector<16x1xf32> to vector<16x1xf32>
      %51 = vector.broadcast %50 : vector<16x1xf32> to vector<16x2xf32>
      %52 = vector.shape_cast %49 : vector<16x1xf32> to vector<16x1xf32>
      %53 = vector.broadcast %52 : vector<16x1xf32> to vector<16x2xf32>
      %54 = arith.select %47, %51, %53 : vector<16x2xi1>, vector<16x2xf32>
      %c0_27 = arith.constant 0 : index
      %c0_28 = arith.constant 0 : index
      %55 = vector.load %arg5[%c0_27, %c0_28] : memref<16x2xf32, #tpu.memory_space<vmem>>, vector<16x2xf32>
      tpu.vector_store %arg5[%c0_27, %c0_28], %54 {strides = array<i32>} : memref<16x2xf32, #tpu.memory_space<vmem>>, vector<16x2xf32>,
    } else {
    }
    return
  }
  func.func @transform_0(%arg0: i32, %arg1: i32) -> (i32, i32) {
    %c1_i32 = arith.constant 1 : i32
    %0 = arith.muli %arg0, %c1_i32 : i32
    %1 = arith.addi %0, %arg1 : i32
    %c0_i32 = arith.constant 0 : i32
    %2 = arith.minsi %1, %c0_i32 : i32
    %c0_i32_0 = arith.constant 0 : i32
    %c0_i32_1 = arith.constant 0 : i32
    return %2, %c0_i32_0 : i32, i32
  }
  func.func @transform_1(%arg0: i32, %arg1: i32) -> (i32, i32) {
    %c1_i32 = arith.constant 1 : i32
    %0 = arith.muli %arg0, %c1_i32 : i32
    %1 = arith.addi %0, %arg1 : i32
    %c0_i32 = arith.constant 0 : i32
    %2 = arith.minsi %1, %c0_i32 : i32
    %c0_i32_0 = arith.constant 0 : i32
    %c0_i32_1 = arith.constant 0 : i32
    return %2, %c0_i32_0 : i32, i32
  }
  func.func @transform_2(%arg0: i32, %arg1: i32) -> (i32, i32) {
    %c1_i32 = arith.constant 1 : i32
    %0 = arith.muli %arg0, %c1_i32 : i32
    %1 = arith.addi %0, %arg1 : i32
    %c0_i32 = arith.constant 0 : i32
    %2 = arith.minsi %1, %c0_i32 : i32
    %c0_i32_0 = arith.constant 0 : i32
    %c0_i32_1 = arith.constant 0 : i32
    return %2, %c0_i32_0 : i32, i32
  }
  func.func @transform_3(%arg0: i32, %arg1: i32) -> (i32, i32) {
    %c0_i32 = arith.constant 0 : i32
    %c0_i32_0 = arith.constant 0 : i32
    return %arg0, %c0_i32 : i32, i32
  }
}

</mosaic_0001>

<llo_original>
// kernel: multi_pred_nll_loss.1
$region0: #{multi_pred_nll_loss.1}
  #allocation0 [shape = 'u32[]', space=smem, size = 0x4, offset = 0x4, fixed_abs, tag = 'smem constant byte address 0x4 - core index']
  #allocation1 [shape = 'u32[144,128]{1,0:T(1,128)}', space=vmem, size = 0x12000, scoped, tag = 'internal scratch']
  #allocation2 [shape = 'f32[16,1]{1,0:T(8,128)}', space=vmem, size = 0x2000, scoped, tag = 'scratch operand']
  #allocation3 [shape = 'f32[16,1]{1,0:T(8,128)}', space=vmem, size = 0x2000, scoped, tag = 'scratch operand']
  %s0 = inlined_call_operand.vmem [shape: f32[16,16], index: 0, kind: input, shape index: {}]
  %s1 = inlined_call_operand.vmem [shape: s32[16,1], index: 1, kind: input, shape index: {}]
  %s2 = inlined_call_operand.vmem [shape: f32[16,1], index: 2, kind: input, shape index: {}]
  %s3 = inlined_call_operand.vmem [shape: f32[16,2], index: 3, kind: output, shape index: {}]
  %s4 = sld [smem:[#allocation0]]
  $region30: #{multi_pred_nll_loss.1} parent=0
    _
  %s6 = ssub.s32 1, %s4
  %s7 = scalar_select 0, %s6, %s4
  // Predicated region
  $region2: #{multi_pred_nll_loss.1} parent=0 // pred_check
    _
  $region3: #{multi_pred_nll_loss.1} parent=0 // pred_check_branch
    %9 = sbr.rel (0) target = $region5
  $region4: #{multi_pred_nll_loss.1} parent=0 // pred_region
    %s10 = sadd.s32 0, 0
    %p11 = scmp.lt.s32.totalorder %s10, 0
    %s12 = scalar_select %p11, %s10, 0
    %s13 = smul.u32 2, %s12
    %p14 = scmp.lt.s32.totalorder %s13, 1
    %s15 = scalar_select %p14, %s13, 1
    %s16 = smul.addr %s15, 8
    %s17 = scalar_lea.vmem %s0, %s16
    %s18 = sadd.s32 0, 0
    %p19 = scmp.lt.s32.totalorder %s18, 0
    %s20 = scalar_select %p19, %s18, 0
    %s21 = smul.u32 2, %s20
  $region5: #{multi_pred_nll_loss.1} parent=0 // pred_fallthru
    _
  // Predicated region
  $region6: #{multi_pred_nll_loss.1} parent=0 // pred_check
    _
  $region7: #{multi_pred_nll_loss.1} parent=0 // pred_check_branch
    %23 = sbr.rel (0) target = $region9
  $region8: #{multi_pred_nll_loss.1} parent=0 // pred_region
    %s24 = sadd.s32 0, 0
    %p25 = scmp.lt.s32.totalorder %s24, 0
    %s26 = scalar_select %p25, %s24, 0
    %s27 = smul.u32 2, %s26
    %p28 = scmp.lt.s32.totalorder %s27, 1
    %s29 = scalar_select %p28, %s27, 1
    %s30 = smul.addr %s29, 8
    %s31 = scalar_lea.vmem %s1, %s30
    %s32 = sadd.s32 0, 0
    %p33 = scmp.lt.s32.totalorder %s32, 0
    %s34 = scalar_select %p33, %s32, 0
    %s35 = smul.u32 2, %s34
  $region9: #{multi_pred_nll_loss.1} parent=0 // pred_fallthru
    _
  // Predicated region
  $region10: #{multi_pred_nll_loss.1} parent=0 // pred_check
    _
  $region11: #{multi_pred_nll_loss.1} parent=0 // pred_check_branch
    %37 = sbr.rel (0) target = $region13
  $region12: #{multi_pred_nll_loss.1} parent=0 // pred_region
    %s38 = sadd.s32 0, 0
    %p39 = scmp.lt.s32.totalorder %s38, 0
    %s40 = scalar_select %p39, %s38, 0
    %s41 = smul.u32 2, %s40
    %p42 = scmp.lt.s32.totalorder %s41, 1
    %s43 = scalar_select %p42, %s41, 1
    %s44 = smul.addr %s43, 8
    %s45 = scalar_lea.vmem %s2, %s44
    %s46 = sadd.s32 0, 0
    %p47 = scmp.lt.s32.totalorder %s46, 0
    %s48 = scalar_select %p47, %s46, 0
    %s49 = smul.u32 2, %s48
  $region13: #{multi_pred_nll_loss.1} parent=0 // pred_fallthru
    _
  %s50 = sadd.s32 0, 0
  %p51 = scmp.lt.s32.totalorder %s50, 0
  %s52 = scalar_select %p51, %s50, 0
  %s53 = smul.u32 2, %s52
  %p54 = scmp.lt.s32.totalorder %s53, 1
  %s55 = scalar_select %p54, %s53, 1
  %s56 = smul.addr %s55, 8
  %s57 = scalar_lea.vmem %s0, %s56
  %s58 = sadd.s32 0, 0
  %p59 = scmp.lt.s32.totalorder %s58, 0
  %s60 = scalar_select %p59, %s58, 0
  %s61 = smul.u32 2, %s60
  %p62 = scmp.lt.s32.totalorder %s61, 1
  %s63 = scalar_select %p62, %s61, 1
  %s64 = smul.addr %s63, 8
  %s65 = scalar_lea.vmem %s1, %s64
  %s66 = sadd.s32 0, 0
  %p67 = scmp.lt.s32.totalorder %s66, 0
  %s68 = scalar_select %p67, %s66, 0
  %s69 = smul.u32 2, %s68
  %p70 = scmp.lt.s32.totalorder %s69, 1
  %s71 = scalar_select %p70, %s69, 1
  %s72 = smul.addr %s71, 8
  %s73 = scalar_lea.vmem %s2, %s72
  %s74 = sadd.s32 0, 0
  %p75 = scmp.lt.s32.totalorder %s74, 0
  %s76 = scalar_select %p75, %s74, 0
  %s77 = smul.u32 2, %s76
  %p78 = scmp.lt.s32.totalorder %s77, 1
  %s79 = scalar_select %p78, %s77, 1
  %s80 = smul.addr %s79, 8
  %s81 = scalar_lea.vmem %s0, %s80
  %s82 = sadd.s32 0, 0
  %p83 = scmp.lt.s32.totalorder %s82, 0
  %s84 = scalar_select %p83, %s82, 0
  %s85 = smul.u32 2, %s84
  %s86 = sadd.s32 0, 0
  %p87 = scmp.lt.s32.totalorder %s86, 0
  %s88 = scalar_select %p87, %s86, 0
  %s89 = smul.u32 2, %s88
  %p90 = scmp.lt.s32.totalorder %s89, 1
  %s91 = scalar_select %p90, %s89, 1
  %s92 = smul.addr %s91, 8
  %s93 = scalar_lea.vmem %s1, %s92
  %s94 = sadd.s32 0, 0
  %p95 = scmp.lt.s32.totalorder %s94, 0
  %s96 = scalar_select %p95, %s94, 0
  %s97 = smul.u32 2, %s96
  %s98 = sadd.s32 0, 0
  %p99 = scmp.lt.s32.totalorder %s98, 0
  %s100 = scalar_select %p99, %s98, 0
  %s101 = smul.u32 2, %s100
  %p102 = scmp.lt.s32.totalorder %s101, 1
  %s103 = scalar_select %p102, %s101, 1
  %s104 = smul.addr %s103, 8
  %s105 = scalar_lea.vmem %s2, %s104
  %s106 = sadd.s32 0, 0
  %p107 = scmp.lt.s32.totalorder %s106, 0
  %s108 = scalar_select %p107, %s106, 0
  %s109 = smul.u32 2, %s108
  %p110 = scmp.eq.s32.totalorder 0, 0
  // Predicated region
  $region14: #{multi_pred_nll_loss.1} parent=0 // pred_check
    %p111 = pneg %p110
  $region15: #{multi_pred_nll_loss.1} parent=0 // pred_check_branch
    %113 = sbr.rel (%p111) target = $region17
  $region16: #{multi_pred_nll_loss.1} parent=0 // pred_region
    %vm114 = vcmask 7168
    %115 = vst.msk [vmem:[#allocation2] sm:$0xff] %vm114, 0.0
    %116 = vst.msk [vmem:[#allocation2 + $0x8] sm:$0xff] %vm114, 0.0
    %117 = vst.msk [vmem:[#allocation3] sm:$0xff] %vm114, 0.0
    %118 = vst.msk [vmem:[#allocation3 + $0x8] sm:$0xff] %vm114, 0.0
  $region17: #{multi_pred_nll_loss.1} parent=0 // pred_fallthru
    _
  %v119 = vld [vmem:[%s81] sm:$0xff]
  %v120 = vld [vmem:[%s81 + $0x8] sm:$0xff]
  %v121 = vld [vmem:[%s93] sm:$0xff]
  %v122 = vld [vmem:[%s93 + $0x8] sm:$0xff]
  %v123 = vld [vmem:[%s105] sm:$0xff]
  %v124 = vld [vmem:[%s105 + $0x8] sm:$0xff]
  %vm125 = vcmask 130048
  %v126 = vsel %vm125, %v119, -inf
  %127 = vmax.xlane.f32.xlu0 %v126
  %v128 = vpop.xlane.xlu0 %127
  %v129 = vsel %vm125, %v120, -inf
  %130 = vmax.xlane.f32.xlu0 %v129
  %v131 = vpop.xlane.xlu0 %130
  %v132 = vsub.f32 %v119, %v128
  %v133 = vsub.f32 %v120, %v131
  %v134 = vmul.f32 %v132, 1.442695
  %v135 = vpow.pop %v134
  %v136 = vmul.f32 %v133, 1.442695
  %v137 = vpow.pop %v136
  %v138 = vsel %vm125, %v135, 0.0
  %139 = vadd.xlane.f32.xlu0 %v138
  %v140 = vpop.xlane.xlu0 %139
  %v141 = vsel %vm125, %v137, 0.0
  %142 = vadd.xlane.f32.xlu0 %v141
  %v143 = vpop.xlane.xlu0 %142
  %v144 = vlog2.pop %v140
  %v145 = vmul.f32 %v144, 0.6931472
  %v146 = vlog2.pop %v143
  %v147 = vmul.f32 %v146, 0.6931472
  %v148 = vadd.f32 %v128, %v145
  %v149 = vadd.f32 %v131, %v147
  %v150 = vlaneseq
  %v151 = vand.u32 %v150, 127
  %152 = vset.pattern.permute.xlu0 0
  %153 = vperm.xlu0 %152, %v121
  %v154 = vpop.permute.xlu0 %153
  %155 = vset.pattern.permute.xlu0 0
  %156 = vperm.xlu0 %155, %v122
  %v157 = vpop.permute.xlu0 %156
  %vm158 = vcmp.eq.s32.totalorder %v151, %v154
  %vm159 = vcmp.eq.s32.totalorder %v151, %v157
  %v160 = vsel %vm158, %v119, 0.0
  %v161 = vsel %vm159, %v120, 0.0
  %v162 = vsel %vm125, %v160, 0.0
  %163 = vadd.xlane.f32.xlu0 %v162
  %v164 = vpop.xlane.xlu0 %163
  %v165 = vsel %vm125, %v161, 0.0
  %166 = vadd.xlane.f32.xlu0 %v165
  %v167 = vpop.xlane.xlu0 %166
  %s168 = sadd.s32 0, 0
  %s169 = smul.u32 %s168, 16
  %v170 = vlaneseq
  %v171 = vshrl.u32 %v170, 7
  %v172 = vadd.s32 %v171, 8
  %v173 = vstv %s169
  %v174 = vadd.s32 %v173, %v171
  %v175 = vadd.s32 %v173, %v172
  %vm176 = vcmp.lt.s32.totalorder %v174, 16
  %vm177 = vcmp.lt.s32.totalorder %v175, 16
  %v178 = vld [vmem:[#allocation2] sm:$0xff]
  %v179 = vld [vmem:[#allocation2 + $0x8] sm:$0xff]
  %v180 = vsub.f32 %v148, %v164
  %v181 = vsub.f32 %v149, %v167
  %v182 = vmul.f32 %v123, %v180
  %v183 = vmul.f32 %v124, %v181
  %v184 = vsel %vm176, %v182, 0.0
  %v185 = vsel %vm177, %v183, 0.0
  %v186 = vadd.f32 %v178, %v184
  %v187 = vadd.f32 %v179, %v185
  %vm188 = vcmask 7168
  %189 = vst.msk [vmem:[#allocation2] sm:$0xff] %vm188, %v186
  %190 = vst.msk [vmem:[#allocation2 + $0x8] sm:$0xff] %vm188, %v187
  %v191 = vld [vmem:[#allocation3] sm:$0xff]
  %v192 = vld [vmem:[#allocation3 + $0x8] sm:$0xff]
  %v193 = vsel %vm176, %v123, 0.0
  %v194 = vsel %vm177, %v124, 0.0
  %v195 = vadd.f32 %v191, %v193
  %v196 = vadd.f32 %v192, %v194
  %197 = vst.msk [vmem:[#allocation3] sm:$0xff] %vm188, %v195
  %198 = vst.msk [vmem:[#allocation3 + $0x8] sm:$0xff] %vm188, %v196
  // Predicated region
  $region18: #{multi_pred_nll_loss.1} parent=0 // pred_check
    %p199 = pneg %p110
  $region19: #{multi_pred_nll_loss.1} parent=0 // pred_check_branch
    %201 = sbr.rel (%p199) target = $region21
  $region20: #{multi_pred_nll_loss.1} parent=0 // pred_region
    %vm202 = vcmp.eq.s32.totalorder %v151, 0
    %v203 = vld [vmem:[#allocation2] sm:$0xff]
    %v204 = vld [vmem:[#allocation2 + $0x8] sm:$0xff]
    %v205 = vld [vmem:[#allocation3] sm:$0xff]
    %v206 = vld [vmem:[#allocation3 + $0x8] sm:$0xff]
    %208 = vset.pattern.permute.xlu0 0
    %209 = vperm.xlu0 %208, %v203
    %v210 = vpop.permute.xlu0 %209
    %213 = vset.pattern.permute.xlu0 0
    %214 = vperm.xlu0 %213, %v204
    %v215 = vpop.permute.xlu0 %214
    %218 = vset.pattern.permute.xlu0 0
    %219 = vperm.xlu0 %218, %v205
    %v220 = vpop.permute.xlu0 %219
    %223 = vset.pattern.permute.xlu0 0
    %224 = vperm.xlu0 %223, %v206
    %v225 = vpop.permute.xlu0 %224
    %v227 = vsel %vm202, %v210, %v220
    %v228 = vsel %vm202, %v215, %v225
    %vm229 = vcmask 15360
    %230 = vst.msk [vmem:[%s3] sm:$0xff] %vm229, %v227
    %231 = vst.msk [vmem:[%s3 + $0x8] sm:$0xff] %vm229, %v228
  $region21: #{multi_pred_nll_loss.1} parent=0 // pred_fallthru
    _
  // Predicated region
  $region22: #{multi_pred_nll_loss.1} parent=0 // pred_check
    _
  $region23: #{multi_pred_nll_loss.1} parent=0 // pred_check_branch
    %233 = sbr.rel (0) target = $region25
  $region24: #{multi_pred_nll_loss.1} parent=0 // pred_region
    _
  $region25: #{multi_pred_nll_loss.1} parent=0 // pred_fallthru
    _
  // Predicated region
  $region26: #{multi_pred_nll_loss.1} parent=0 // pred_check
    _
  $region27: #{multi_pred_nll_loss.1} parent=0 // pred_check_branch
    %235 = sbr.rel (0) target = $region29
  $region28: #{multi_pred_nll_loss.1} parent=0 // pred_region
    _
  $region29: #{multi_pred_nll_loss.1} parent=0 // pred_fallthru
    _

</llo_original>
